<compile_context>
chip_gen: v7x
topology: tpu7x:2x2x1
jax: 0.10.0
libtpu: 0.0.40
codegen_flags: <defaults>
</compile_context>

<pallas_src>
import functools

import jax
import jax.numpy as jnp
from jax.experimental import pallas as pl
from jax.experimental.pallas import tpu as pltpu


def _filter_layer_kernel(x_ref, w1_ref, b1_ref, w2_ref, b2_ref, o_ref, hacc_ref,
                         *, inv_hw):
    # x_ref : (Bt, c_tile, HW)  native NCHW tile, HW on lanes
    # w1_ref: (c_tile, hidden)  j-th row-block of W1
    # b1_ref: (1, hidden)   w2_ref: (hidden, out)   b2_ref: (1, out)
    # o_ref : (Bt, 1, out)  hacc_ref: (Bt, hidden) fp32 running first-Linear acc
    j = pl.program_id(1)

    @pl.when(j == 0)
    def _():
        hacc_ref[...] = jnp.zeros_like(hacc_ref)

    # Streamed global sum over the spatial (lane) axis, fp32.
    pooled_sum = jnp.sum(x_ref[...].astype(jnp.float32), axis=-1)   # (Bt, c_tile)
    # Fold the first Linear into the streaming loop: accumulate the partial
    # contribution of this channel block.  (Mean scale is applied once at the
    # end: (sum @ W1) * inv_hw == (sum * inv_hw) @ W1.)
    hacc_ref[...] += jnp.dot(pooled_sum, w1_ref[...].astype(jnp.float32),
                             preferred_element_type=jnp.float32)

    @pl.when(j == pl.num_programs(1) - 1)
    def _():
        h = jnp.maximum(hacc_ref[...] * inv_hw + b1_ref[...].astype(jnp.float32),
                        0.0)                                         # (Bt, hidden)
        z = jnp.dot(h, w2_ref[...].astype(jnp.float32),
                    preferred_element_type=jnp.float32)
        z = z + b2_ref[...].astype(jnp.float32)                      # (Bt, out)
        gate = jax.nn.sigmoid(z)
        o_ref[...] = jnp.expand_dims(gate, 1).astype(o_ref.dtype)    # (Bt, 1, out)


def _pick_c_tile(C, HW, itemsize, block_bytes):
    """Channel-streaming tile: full C if one image fits, else the largest
    multiple-of-8 divisor of C whose slab fits block_bytes."""
    per_image = C * HW * itemsize
    if per_image <= block_bytes or C % 8 != 0:
        return C
    best = None
    for d in range(8, C + 1, 8):
        if C % d == 0 and d * HW * itemsize <= block_bytes:
            best = d
    return best if best is not None else 8


def _pick_bt(B, block_img_bytes, block_bytes):
    """Batch blocking: the largest divisor of B whose x block fits block_bytes."""
    cap = max(1, block_bytes // max(1, block_img_bytes))
    bt = 1
    for d in range(1, B + 1):
        if B % d == 0 and d <= cap:
            bt = d
    return bt


def filter_layer(x, w1, b1, w2, b2, *, block_bytes=4 * 1024 * 1024):
    """x: (B, C, H, W) -> (B, out_planes, 1, 1).

    Weights follow torch.nn.Linear semantics but are stored pre-transposed as
    (in, out), so the kernel does plain row-major matmuls.  bf16 x is
    supported (fp32 accumulation inside the kernel).
    """
    B, C, H, W = x.shape
    hidden = w1.shape[1]
    out_planes = w2.shape[1]
    HW = H * W

    # Metadata-only reshape: NO HBM traffic (this replaces the old transpose).
    x3 = x.reshape(B, C, HW)

    itemsize = jnp.dtype(x.dtype).itemsize
    c_tile = _pick_c_tile(C, HW, itemsize, block_bytes)
    ncb = C // c_tile
    Bt = _pick_bt(B, c_tile * HW * itemsize, block_bytes)
    nbb = B // Bt

    b1_2d = b1.reshape(1, hidden)
    b2_2d = b2.reshape(1, out_planes)

    kernel = functools.partial(_filter_layer_kernel, inv_hw=1.0 / float(HW))

    def _nbytes(a):
        return int(a.size) * jnp.dtype(a.dtype).itemsize

    cost = pl.CostEstimate(
        flops=int(B * HW * C + 2 * B * (C * hidden + hidden * out_planes)),
        transcendentals=int(B * out_planes),
        bytes_accessed=int(_nbytes(x3) + _nbytes(w1) + _nbytes(w2)
                           + _nbytes(b1) + _nbytes(b2) + B * out_planes * 4),
    )

    out = pl.pallas_call(
        kernel,
        out_shape=jax.ShapeDtypeStruct((B, 1, out_planes), jnp.float32),
        grid_spec=pltpu.PrefetchScalarGridSpec(
            num_scalar_prefetch=0,
            grid=(nbb, ncb),
            in_specs=[
                pl.BlockSpec((Bt, c_tile, HW), lambda i, j: (i, j, 0)),
                pl.BlockSpec((c_tile, hidden), lambda i, j: (j, 0)),
                pl.BlockSpec((1, hidden), lambda i, j: (0, 0)),
                pl.BlockSpec((hidden, out_planes), lambda i, j: (0, 0)),
                pl.BlockSpec((1, out_planes), lambda i, j: (0, 0)),
            ],
            # Constant over j => output block stays VMEM-resident across the
            # channel-streaming reduction (accumulate/finalize pattern).
            out_specs=pl.BlockSpec((Bt, 1, out_planes), lambda i, j: (i, 0, 0)),
            scratch_shapes=[pltpu.VMEM((Bt, hidden), jnp.float32)],
        ),
        compiler_params=pltpu.CompilerParams(
            dimension_semantics=("parallel", "arbitrary")),
        cost_estimate=cost,
    )(x3, w1, b1_2d, w2, b2_2d)

    return out.reshape(B, out_planes, 1, 1)


def _reference(x, w1, b1, w2, b2):
    y_pool = jnp.mean(x.astype(jnp.float32), axis=(2, 3))
    h = jnp.maximum(y_pool @ w1 + b1, 0.0)
    y = jax.nn.sigmoid(h @ w2 + b2)
    return y.reshape(x.shape[0], w2.shape[1], 1, 1)


if __name__ == "__main__":
    key = jax.random.PRNGKey(0)

    # --- Test 1: small shapes consistent with the module (reduction=16).
    # Single-block fast path: Bt = B, ncb = 1 (one DMA per pair of images). ---
    B, C, H, W = 2, 32, 16, 16          # in_planes = C = 32
    out_planes, reduction = 64, 16
    hidden = out_planes // reduction    # 4

    (kx, kw1, kb1, kw2, kb2, kx2, kw3, kb3, kw4, kb4,
     kx3, kw5, kb5, kw6, kb6) = jax.random.split(key, 15)
    x = jax.random.normal(kx, (B, C, H, W), dtype=jnp.float32)
    w1 = jax.random.normal(kw1, (C, hidden), dtype=jnp.float32) * 0.1
    b1 = jax.random.normal(kb1, (hidden,), dtype=jnp.float32) * 0.1
    w2 = jax.random.normal(kw2, (hidden, out_planes), dtype=jnp.float32) * 0.1
    b2 = jax.random.normal(kb2, (out_planes,), dtype=jnp.float32) * 0.1

    y = filter_layer(x, w1, b1, w2, b2)
    jax.block_until_ready(y)
    y_ref = _reference(x, w1, b1, w2, b2)
    assert y.shape == (B, out_planes, 1, 1)
    assert jnp.allclose(y, y_ref, atol=1e-5, rtol=1e-5)

    # --- Test 2: odd spatial size (7x7) + forced tiny block budget to exercise
    # the channel-streamed accumulation (c_tile=8, 6 steps) and batch loop. ---
    B2, C2, H2, W2 = 3, 48, 7, 7
    out2, red2 = 32, 16
    hid2 = out2 // red2                 # 2
    x2 = jax.random.normal(kx2, (B2, C2, H2, W2), dtype=jnp.float32)
    w3 = jax.random.normal(kw3, (C2, hid2), dtype=jnp.float32) * 0.1
    b3 = jax.random.normal(kb3, (hid2,), dtype=jnp.float32) * 0.1
    w4 = jax.random.normal(kw4, (hid2, out2), dtype=jnp.float32) * 0.1
    b4 = jax.random.normal(kb4, (hid2 and hid2, out2) if False else (hid2, out2),
                           dtype=jnp.float32) * 0.1
    b4 = jax.random.normal(kb4, (out2,), dtype=jnp.float32) * 0.1

    y2 = filter_layer(x2, w3, b3, w4, b4, block_bytes=2048)  # c_tile=8, 6 c-steps
    jax.block_until_ready(y2)
    y2_ref = _reference(x2, w3, b3, w4, b4)
    assert y2.shape == (B2, out2, 1, 1)
    assert jnp.allclose(y2, y2_ref, atol=1e-5, rtol=1e-5)

    # --- Test 3: bf16 activations (fp32 in-kernel accumulation), streamed. ---
    B3, C3, H3, W3 = 2, 64, 7, 7
    out3, red3 = 64, 16
    hid3 = out3 // red3                 # 4
    x3 = jax.random.normal(kx3, (B3, C3, H3, W3), dtype=jnp.bfloat16)
    w5 = jax.random.normal(kw5, (C3, hid3), dtype=jnp.float32) * 0.1
    b5 = jax.random.normal(kb5, (hid3,), dtype=jnp.float32) * 0.1
    w6 = jax.random.normal(kw6, (hid3, out3), dtype=jnp.float32) * 0.1
    b6 = jax.random.normal(kb6, (out3,), dtype=jnp.float32) * 0.1

    y3 = filter_layer(x3, w5, b5, w6, b6, block_bytes=4096)  # c_tile=32, 2 c-steps
    jax.block_until_ready(y3)
    y3_ref = _reference(x3, w5, b5, w6, b6)
    assert y3.shape == (B3, out3, 1, 1)
    assert jnp.allclose(y3, y3_ref, atol=2e-3, rtol=2e-3)

    print("KERNEL_OK")
</pallas_src>

<mosaic_0001>
module attributes {stable_mosaic.version = 11 : i64} {
  func.func @_filter_layer_kernel(%arg0: i32, %arg1: i32, %arg2: memref<2x32x256xf32, #tpu.memory_space<vmem>>, %arg3: memref<32x4xf32, #tpu.memory_space<vmem>>, %arg4: memref<1x4xf32, #tpu.memory_space<vmem>>, %arg5: memref<4x64xf32, #tpu.memory_space<vmem>>, %arg6: memref<1x64xf32, #tpu.memory_space<vmem>>, %arg7: memref<2x1x64xf32, #tpu.memory_space<vmem>>, %arg8: memref<2x4xf32, #tpu.memory_space<vmem>>) attributes {dimension_semantics = [#tpu.dimension_semantics<parallel>, #tpu.dimension_semantics<arbitrary>], iteration_bounds = array<i64: 1, 1>, scalar_prefetch = 0 : i64, scratch_operands = 1 : i64, tpu.core_type = #tpu.core_type<tc>, window_params = [{transform_indices = @transform_0, window_bounds = array<i64: 2, 32, 256>}, {transform_indices = @transform_1, window_bounds = array<i64: 32, 4>}, {pipeline_mode = #tpu.pipeline_mode<synchronous>, transform_indices = @transform_2, window_bounds = array<i64: 1, 4>}, {pipeline_mode = #tpu.pipeline_mode<synchronous>, transform_indices = @transform_3, window_bounds = array<i64: 4, 64>}, {pipeline_mode = #tpu.pipeline_mode<synchronous>, transform_indices = @transform_4, window_bounds = array<i64: 1, 64>}, {transform_indices = @transform_5, window_bounds = array<i64: 2, 1, 64>}]} {
    %c0_i32 = arith.constant 0 : i32
    %0 = arith.cmpi eq, %arg1, %c0_i32 : i32
    %1 = arith.extui %0 : i1 to i32
    %c0_i32_0 = arith.constant 0 : i32
    %2 = arith.cmpi ne, %1, %c0_i32_0 : i32
    scf.if %2 {
      %cst_12 = arith.constant 0.000000e+00 : f32
      %13 = vector.broadcast %cst_12 : f32 to vector<2x4xf32>
      %c0_13 = arith.constant 0 : index
      %c0_14 = arith.constant 0 : index
      %14 = vector.load %arg8[%c0_13, %c0_14] : memref<2x4xf32, #tpu.memory_space<vmem>>, vector<2x4xf32>
      tpu.vector_store %arg8[%c0_13, %c0_14], %13 {strides = array<i32>} : memref<2x4xf32, #tpu.memory_space<vmem>>, vector<2x4xf32>,
    } else {
    }
    %c0 = arith.constant 0 : index
    %c0_1 = arith.constant 0 : index
    %c0_2 = arith.constant 0 : index
    %3 = vector.load %arg2[%c0, %c0_1, %c0_2] : memref<2x32x256xf32, #tpu.memory_space<vmem>>, vector<2x32x256xf32>
    %cst = arith.constant dense<0.000000e+00> : vector<2x32xf32>
    %4 = vector.multi_reduction <add>, %3, %cst [2] : vector<2x32x256xf32> to vector<2x32xf32>
    %c0_3 = arith.constant 0 : index
    %c0_4 = arith.constant 0 : index
    %5 = vector.load %arg8[%c0_3, %c0_4] : memref<2x4xf32, #tpu.memory_space<vmem>>, vector<2x4xf32>
    %c0_5 = arith.constant 0 : index
    %c0_6 = arith.constant 0 : index
    %6 = vector.load %arg3[%c0_5, %c0_6] : memref<32x4xf32, #tpu.memory_space<vmem>>, vector<32x4xf32>
    %cst_7 = arith.constant dense<0.000000e+00> : vector<2x4xf32>
    %7 = tpu.matmul %4, %6, %cst_7 {dimension_numbers = #tpu.dot_dimension_numbers<[1], [0], [0], [1], [0, 0, 1, 1], [], []>} : vector<2x32xf32>, vector<32x4xf32>, vector<2x4xf32> -> vector<2x4xf32>
    %8 = arith.addf %5, %7 : vector<2x4xf32>
    %c0_8 = arith.constant 0 : index
    %c0_9 = arith.constant 0 : index
    %9 = vector.load %arg8[%c0_8, %c0_9] : memref<2x4xf32, #tpu.memory_space<vmem>>, vector<2x4xf32>
    tpu.vector_store %arg8[%c0_8, %c0_9], %8 {strides = array<i32>} : memref<2x4xf32, #tpu.memory_space<vmem>>, vector<2x4xf32>,
    %c0_i32_10 = arith.constant 0 : i32
    %10 = arith.cmpi eq, %arg1, %c0_i32_10 : i32
    %11 = arith.extui %10 : i1 to i32
    %c0_i32_11 = arith.constant 0 : i32
    %12 = arith.cmpi ne, %11, %c0_i32_11 : i32
    scf.if %12 {
      %c0_12 = arith.constant 0 : index
      %c0_13 = arith.constant 0 : index
      %13 = vector.load %arg8[%c0_12, %c0_13] : memref<2x4xf32, #tpu.memory_space<vmem>>, vector<2x4xf32>
      %cst_14 = arith.constant 3.906250e-03 : f32
      %14 = vector.broadcast %cst_14 : f32 to vector<2x4xf32>
      %15 = arith.mulf %13, %14 : vector<2x4xf32>
      %c0_15 = arith.constant 0 : index
      %c0_16 = arith.constant 0 : index
      %16 = vector.load %arg4[%c0_15, %c0_16] : memref<1x4xf32, #tpu.memory_space<vmem>>, vector<1x4xf32>
      %17 = vector.broadcast %16 : vector<1x4xf32> to vector<2x4xf32>
      %18 = arith.addf %15, %17 : vector<2x4xf32>
      %cst_17 = arith.constant 0.000000e+00 : f32
      %19 = vector.broadcast %cst_17 : f32 to vector<2x4xf32>
      %20 = arith.maximumf %18, %19 : vector<2x4xf32>
      %c0_18 = arith.constant 0 : index
      %c0_19 = arith.constant 0 : index
      %21 = vector.load %arg5[%c0_18, %c0_19] : memref<4x64xf32, #tpu.memory_space<vmem>>, vector<4x64xf32>
      %cst_20 = arith.constant dense<0.000000e+00> : vector<2x64xf32>
      %22 = tpu.matmul %20, %21, %cst_20 {dimension_numbers = #tpu.dot_dimension_numbers<[1], [0], [0], [1], [0, 0, 1, 1], [], []>} : vector<2x4xf32>, vector<4x64xf32>, vector<2x64xf32> -> vector<2x64xf32>
      %c0_21 = arith.constant 0 : index
      %c0_22 = arith.constant 0 : index
      %23 = vector.load %arg6[%c0_21, %c0_22] : memref<1x64xf32, #tpu.memory_space<vmem>>, vector<1x64xf32>
      %24 = vector.broadcast %23 : vector<1x64xf32> to vector<2x64xf32>
      %25 = arith.addf %22, %24 : vector<2x64xf32>
      %26 = arith.negf %25 : vector<2x64xf32>
      %27 = math.exp %26 : vector<2x64xf32>
      %cst_23 = arith.constant 1.000000e+00 : f32
      %28 = vector.broadcast %cst_23 : f32 to vector<2x64xf32>
      %29 = arith.addf %28, %27 : vector<2x64xf32>
      %30 = arith.divf %28, %29 : vector<2x64xf32>
      %31 = vector.shape_cast %30 : vector<2x64xf32> to vector<2x1x64xf32>
      %c0_24 = arith.constant 0 : index
      %c0_25 = arith.constant 0 : index
      %c0_26 = arith.constant 0 : index
      %32 = vector.load %arg7[%c0_24, %c0_25, %c0_26] : memref<2x1x64xf32, #tpu.memory_space<vmem>>, vector<2x1x64xf32>
      tpu.vector_store %arg7[%c0_24, %c0_25, %c0_26], %31 {strides = array<i32>} : memref<2x1x64xf32, #tpu.memory_space<vmem>>, vector<2x1x64xf32>,
    } else {
    }
    return
  }
  func.func @transform_0(%arg0: i32, %arg1: i32) -> (i32, i32, i32) {
    %c0_i32 = arith.constant 0 : i32
    %c0_i32_0 = arith.constant 0 : i32
    return %arg0, %arg1, %c0_i32 : i32, i32, i32
  }
  func.func @transform_1(%arg0: i32, %arg1: i32) -> (i32, i32) {
    %c0_i32 = arith.constant 0 : i32
    %c0_i32_0 = arith.constant 0 : i32
    return %arg1, %c0_i32 : i32, i32
  }
  func.func @transform_2(%arg0: i32, %arg1: i32) -> (i32, i32) {
    %c0_i32 = arith.constant 0 : i32
    %c0_i32_0 = arith.constant 0 : i32
    %c0_i32_1 = arith.constant 0 : i32
    return %c0_i32, %c0_i32_0 : i32, i32
  }
  func.func @transform_3(%arg0: i32, %arg1: i32) -> (i32, i32) {
    %c0_i32 = arith.constant 0 : i32
    %c0_i32_0 = arith.constant 0 : i32
    %c0_i32_1 = arith.constant 0 : i32
    return %c0_i32, %c0_i32_0 : i32, i32
  }
  func.func @transform_4(%arg0: i32, %arg1: i32) -> (i32, i32) {
    %c0_i32 = arith.constant 0 : i32
    %c0_i32_0 = arith.constant 0 : i32
    %c0_i32_1 = arith.constant 0 : i32
    return %c0_i32, %c0_i32_0 : i32, i32
  }
  func.func @transform_5(%arg0: i32, %arg1: i32) -> (i32, i32, i32) {
    %c0_i32 = arith.constant 0 : i32
    %c0_i32_0 = arith.constant 0 : i32
    %c0_i32_1 = arith.constant 0 : i32
    return %arg0, %c0_i32, %c0_i32_0 : i32, i32, i32
  }
}

</mosaic_0001>

<llo_original>
// kernel: tpu_custom_call.1
$region0: #{tpu_custom_call.1}
  #allocation0 [shape = 'u32[]', space=smem, size = 0x4, offset = 0x4, fixed_abs, tag = 'smem constant byte address 0x4 - core index']
  #allocation1 [shape = 'u32[144,128]{1,0:T(1,128)}', space=vmem, size = 0x12000, scoped, tag = 'internal scratch']
  #allocation2 [shape = 'f32[2,4]{1,0:T(2,128)}', space=vmem, size = 0x400, scoped, tag = 'scratch operand']
  %s0 = inlined_call_operand.hbm [shape: f32[2,32,256], index: 0, kind: input, shape index: {}]
  %s1 = inlined_call_operand.vmem [shape: f32[32,4], index: 1, kind: input, shape index: {}]
  %s2 = inlined_call_operand.vmem [shape: f32[1,4], index: 2, kind: input, shape index: {}]
  %s3 = inlined_call_operand.vmem [shape: f32[4,64], index: 3, kind: input, shape index: {}]
  %s4 = inlined_call_operand.vmem [shape: f32[1,64], index: 4, kind: input, shape index: {}]
  %s5 = inlined_call_operand.hbm [shape: f32[2,1,64], index: 5, kind: output, shape index: {}]
  %s6 = sld [smem:[#allocation0]]
  $region42: #{tpu_custom_call.1} parent=0
    _
  %s8 = ssub.s32 1, %s6
  %s9 = scalar_select 0, %s8, %s6
  $region1: #{tpu_custom_call.1} parent=0
    #allocation3 [shape = 'u8[65536]{0}', space=vmem, size = 0x10000, scoped, tag = 'input window, operand 0, single buffered']
    #allocation4 [shape = 's32[1]{0}', space=sflag, size = 0x4, scoped, tag = 'scoped memory for tpu_custom_call.1']
    #allocation5 [shape = 's32[1]{0}', space=sflag, size = 0x4, scoped, tag = 'scoped memory for tpu_custom_call.1']
    #allocation6 [shape = 'u8[1024]{0}', space=vmem, size = 0x400, scoped, tag = 'output window, operand 0, single buffered']
    %10 = vsyncpa [#allocation4], 0
    %11 = vsyncpa [#allocation5], 0
    // Predicated region
    $region2: #{tpu_custom_call.1} parent=1 // pred_check
      _
    $region3: #{tpu_custom_call.1} parent=1 // pred_check_branch
      %13 = sbr.rel (0) target = $region5
    $region4: #{tpu_custom_call.1} parent=1 // pred_region
      %s15 = ssub.s32 2048, 2048
      %16 = vsyncadd [#allocation4], %s15
      %s17 = sshll.u32 [#allocation3], 4
      %s18 = int_to_ptr.vmem [resolvable:$true] %s17
      %23 = dma.hbm_to_vmem [thread:$0]  %s0, 2048, %s18, [#allocation4], 256, 256, 16
    $region5: #{tpu_custom_call.1} parent=1 // pred_fallthru
      _
    // Predicated region
    $region6: #{tpu_custom_call.1} parent=1 // pred_check
      _
    $region7: #{tpu_custom_call.1} parent=1 // pred_check_branch
      %25 = sbr.rel (0) target = $region9
    $region8: #{tpu_custom_call.1} parent=1 // pred_region
      _
    $region9: #{tpu_custom_call.1} parent=1 // pred_fallthru
      _
    // Predicated region
    $region10: #{tpu_custom_call.1} parent=1 // pred_check
      _
    $region11: #{tpu_custom_call.1} parent=1 // pred_check_branch
      %27 = sbr.rel (0) target = $region13
    $region12: #{tpu_custom_call.1} parent=1 // pred_region
      _
    $region13: #{tpu_custom_call.1} parent=1 // pred_fallthru
      _
    // Predicated region
    $region14: #{tpu_custom_call.1} parent=1 // pred_check
      _
    $region15: #{tpu_custom_call.1} parent=1 // pred_check_branch
      %29 = sbr.rel (0) target = $region17
    $region16: #{tpu_custom_call.1} parent=1 // pred_region
      _
    $region17: #{tpu_custom_call.1} parent=1 // pred_fallthru
      _
    // Predicated region
    $region18: #{tpu_custom_call.1} parent=1 // pred_check
      _
    $region19: #{tpu_custom_call.1} parent=1 // pred_check_branch
      %31 = sbr.rel (0) target = $region21
    $region20: #{tpu_custom_call.1} parent=1 // pred_region
      _
    $region21: #{tpu_custom_call.1} parent=1 // pred_fallthru
      _
    // Predicated region
    $region22: #{tpu_custom_call.1} parent=1 // pred_check
      _
    $region23: #{tpu_custom_call.1} parent=1 // pred_check_branch
      %33 = sbr.rel (0) target = $region25
    $region24: #{tpu_custom_call.1} parent=1 // pred_region
      %34 = dma.done [#allocation4], 2048
    $region25: #{tpu_custom_call.1} parent=1 // pred_fallthru
      _
    %p35 = scmp.eq.s32.totalorder 0, 0
    // Predicated region
    $region26: #{tpu_custom_call.1} parent=1 // pred_check
      %p36 = pneg %p35
    $region27: #{tpu_custom_call.1} parent=1 // pred_check_branch
      %38 = sbr.rel (%p36) target = $region29
    $region28: #{tpu_custom_call.1} parent=1 // pred_region
      %vm39 = vcmask 25600
      %40 = vst.msk [vmem:[#allocation2] sm:$0x3] %vm39, 0.0
    $region29: #{tpu_custom_call.1} parent=1 // pred_fallthru
      _
    %v41 = vld [vmem:[#allocation3] sm:$0xff]
    %v42 = vld [vmem:[#allocation3 + $0x8] sm:$0xff]
    %v43 = vld [vmem:[#allocation3 + $0x10] sm:$0xff]
    %v44 = vld [vmem:[#allocation3 + $0x18] sm:$0xff]
    %v45 = vld [vmem:[#allocation3 + $0x20] sm:$0xff]
    %v46 = vld [vmem:[#allocation3 + $0x28] sm:$0xff]
    %v47 = vld [vmem:[#allocation3 + $0x30] sm:$0xff]
    %v48 = vld [vmem:[#allocation3 + $0x38] sm:$0xff]
    %v49 = vld [vmem:[#allocation3 + $0x40] sm:$0xff]
    %v50 = vld [vmem:[#allocation3 + $0x48] sm:$0xff]
    %v51 = vld [vmem:[#allocation3 + $0x50] sm:$0xff]
    %v52 = vld [vmem:[#allocation3 + $0x58] sm:$0xff]
    %v53 = vld [vmem:[#allocation3 + $0x60] sm:$0xff]
    %v54 = vld [vmem:[#allocation3 + $0x68] sm:$0xff]
    %v55 = vld [vmem:[#allocation3 + $0x70] sm:$0xff]
    %v56 = vld [vmem:[#allocation3 + $0x78] sm:$0xff]
    %v57 = vadd.f32 %v41, %v42
    %58 = vadd.xlane.f32.xlu0 %v57
    %v59 = vpop.xlane.xlu0 %58
    %v60 = vadd.f32 %v43, %v44
    %61 = vadd.xlane.f32.xlu0 %v60
    %v62 = vpop.xlane.xlu0 %61
    %v63 = vadd.f32 %v45, %v46
    %64 = vadd.xlane.f32.xlu0 %v63
    %v65 = vpop.xlane.xlu0 %64
    %v66 = vadd.f32 %v47, %v48
    %67 = vadd.xlane.f32.xlu0 %v66
    %v68 = vpop.xlane.xlu0 %67
    %v69 = vadd.f32 %v49, %v50
    %70 = vadd.xlane.f32.xlu0 %v69
    %v71 = vpop.xlane.xlu0 %70
    %v72 = vadd.f32 %v51, %v52
    %73 = vadd.xlane.f32.xlu0 %v72
    %v74 = vpop.xlane.xlu0 %73
    %v75 = vadd.f32 %v53, %v54
    %76 = vadd.xlane.f32.xlu0 %v75
    %v77 = vpop.xlane.xlu0 %76
    %v78 = vadd.f32 %v55, %v56
    %79 = vadd.xlane.f32.xlu0 %v78
    %v80 = vpop.xlane.xlu0 %79
    %v81 = vld [vmem:[#allocation2] sm:$0x3]
    %v82 = vld [vmem:[%s1] sm:$0xff]
    %v83 = vld [vmem:[%s1 + $0x8] sm:$0xff]
    %v84 = vld [vmem:[%s1 + $0x10] sm:$0xff]
    %v85 = vld [vmem:[%s1 + $0x18] sm:$0xff]
    %v94 = vlaneseq
    %v95 = vand.u32 %v94, 127
    %v96 = vlaneseq
    %v97 = vshrl.u32 %v96, 7
    %v98 = vsub.s32 %v95, %v97
    %v99 = vrot.slane %v59, %v98
    %v100 = vadd.s32 %v95, 4294967288
    %v101 = vlaneseq
    %v102 = vshrl.u32 %v101, 7
    %v103 = vsub.s32 %v100, %v102
    %v104 = vrot.slane %v62, %v103
    %vm105 = vcmask 130112
    %v106 = vsel %vm105, %v104, %v99
    %v107 = vadd.s32 %v95, 4294967280
    %v108 = vlaneseq
    %v109 = vshrl.u32 %v108, 7
    %v110 = vsub.s32 %v107, %v109
    %v111 = vrot.slane %v65, %v110
    %vm112 = vcmask 195712
    %v113 = vsel %vm112, %v111, %v106
    %v114 = vadd.s32 %v95, 4294967272
    %v115 = vlaneseq
    %v116 = vshrl.u32 %v115, 7
    %v117 = vsub.s32 %v114, %v116
    %v118 = vrot.slane %v68, %v117
    %vm119 = vcmask 261312
    %v120 = vsel %vm119, %v118, %v113
    %v121 = vlaneseq
    %v122 = vshrl.u32 %v121, 7
    %v123 = vsub.s32 %v95, %v122
    %v124 = vrot.slane %v71, %v123
    %v125 = vlaneseq
    %v126 = vshrl.u32 %v125, 7
    %v127 = vsub.s32 %v100, %v126
    %v128 = vrot.slane %v74, %v127
    %v129 = vsel %vm105, %v128, %v124
    %v130 = vlaneseq
    %v131 = vshrl.u32 %v130, 7
    %v132 = vsub.s32 %v107, %v131
    %v133 = vrot.slane %v77, %v132
    %v134 = vsel %vm112, %v133, %v129
    %v135 = vlaneseq
    %v136 = vshrl.u32 %v135, 7
    %v137 = vsub.s32 %v114, %v136
    %v138 = vrot.slane %v80, %v137
    %v139 = vsel %vm119, %v138, %v134
    %vm140 = vcmask 1041409
    %v141 = vsel %vm140, %v139, %v120
    %vm142 = vcmask 261120
    %v143 = vsel %vm142, %v141, 0
    %145 = vmatprep.subr.mxu0 0.0
    %146 = vmatpush1.msra.mxu0 %v82
    %147 = vmatprep.subr.mxu0 0.0
    %148 = vmatpush1.msra.mxu0 %v83
    %149 = vmatprep.subr.mxu0 0.0
    %150 = vmatpush1.msra.mxu0 %v84
    %151 = vmatprep.subr.mxu0 0.0
    %152 = vmatpush1.msra.mxu0 %v85
    %153 = vmatprep.subr.mxu0 0.0
    %154 = vmatpush1.msra.mxu0 0.0
    %155 = vmatprep.subr.mxu0 0.0
    %156 = vmatpush1.msra.mxu0 0.0
    %157 = vmatprep.subr.mxu0 0.0
    %158 = vmatpush1.msra.mxu0 0.0
    %159 = vmatprep.subr.mxu0 0.0
    %160 = vmatpush1.msra.mxu0 0.0
    %161 = vmatprep.subr.mxu0 0.0
    %162 = vmatpush1.msra.mxu0 0.0
    %163 = vmatprep.subr.mxu0 0.0
    %164 = vmatpush1.msra.mxu0 0.0
    %165 = vmatprep.subr.mxu0 0.0
    %166 = vmatpush1.msra.mxu0 0.0
    %167 = vmatprep.subr.mxu0 0.0
    %168 = vmatpush1.msra.mxu0 0.0
    %169 = vmatprep.subr.mxu0 0.0
    %170 = vmatpush1.msra.mxu0 0.0
    %171 = vmatprep.subr.mxu0 0.0
    %172 = vmatpush1.msra.mxu0 0.0
    %173 = vmatprep.subr.mxu0 0.0
    %174 = vmatpush1.msra.mxu0 0.0
    %175 = vmatprep.subr.mxu0 0.0
    %176 = vmatpush1.msra.mxu0 0.0
    %177 = vmatprep.subr.mxu0 0.0
    %178 = vmatpush1.msra.mxu0 0.0
    %179 = vmatprep.subr.mxu0 0.0
    %180 = vmatpush1.msra.mxu0 0.0
    %181 = vmatprep.subr.mxu0 0.0
    %182 = vmatpush1.msra.mxu0 0.0
    %183 = vmatprep.subr.mxu0 0.0
    %184 = vmatpush1.msra.mxu0 0.0
    %185 = vmatprep.subr.mxu0 0.0
    %186 = vmatpush1.msra.mxu0 0.0
    %187 = vmatprep.subr.mxu0 0.0
    %188 = vmatpush1.msra.mxu0 0.0
    %189 = vmatprep.subr.mxu0 0.0
    %190 = vmatpush1.msra.mxu0 0.0
    %191 = vmatprep.subr.mxu0 0.0
    %192 = vmatpush1.msra.mxu0 0.0
    %193 = vmatprep.subr.mxu0 0.0
    %194 = vmatpush1.msra.mxu0 0.0
    %195 = vmatprep.subr.mxu0 0.0
    %196 = vmatpush1.msra.mxu0 0.0
    %197 = vmatprep.subr.mxu0 0.0
    %198 = vmatpush1.msra.mxu0 0.0
    %199 = vmatprep.subr.mxu0 0.0
    %200 = vmatpush1.msra.mxu0 0.0
    %201 = vmatprep.subr.mxu0 0.0
    %202 = vmatpush1.msra.mxu0 0.0
    %203 = vmatprep.subr.mxu0 0.0
    %204 = vmatpush1.msra.mxu0 0.0
    %205 = vmatprep.subr.mxu0 0.0
    %206 = vmatpush1.msra.mxu0 0.0
    %207 = vmatprep.subr.mxu0 0.0
    %208 = vmatpush1.msra.mxu0 0.0
    %209 = vmatprep.mubr.f32.mxu0 0.0
    %210 = vmatmul.mubr.f32.gmra.mrb[0].mxu0 %v143
    %v211 = vpop.f32.mrb[0].mxu0
    %v212 = vadd.f32 0.0, %v211
    %v213 = vpop.f32.mrb[0].mxu0
    %214 = vdwg.mxu0
    %v215 = vadd.f32 %v81, %v212
    %vm216 = vcmask 25600
    %217 = vst.msk [vmem:[#allocation2] sm:$0x3] %vm216, %v215
    // Predicated region
    $region30: #{tpu_custom_call.1} parent=1 // pred_check
      %p218 = pneg %p35
    $region31: #{tpu_custom_call.1} parent=1 // pred_check_branch
      %220 = sbr.rel (%p218) target = $region33
    $region32: #{tpu_custom_call.1} parent=1 // pred_region
      %v221 = vld [vmem:[#allocation2] sm:$0x3]
      %v222 = vmul.f32 %v221, 0.00390625
      %v223 = vld [vmem:[%s2] sm:$0x1]
      %v225 = vlaneseq
      %v226 = vshrl.u32 %v225, 7
      %v227 = vsub.s32 0, %v226
      %v228 = vrot.slane %v223, %v227
      %v230 = vadd.f32 %v222, %v228
      %v231 = vmax.f32 %v230, 0.0
      %v232 = vld [vmem:[%s3] sm:$0xf]
      %v233 = vld [vmem:[%s4] sm:$0x1]
      %v235 = vlaneseq
      %v236 = vshrl.u32 %v235, 7
      %v237 = vsub.s32 0, %v236
      %v238 = vrot.slane %v233, %v237
      %vm240 = vcmask 31744
      %v242 = vsel %vm240, %v231, 0
      %vm244 = vcmask 1043456
      %v246 = vsel %vm244, %v232, 0
      %248 = vmatprep.subr.mxu0 0.0
      %249 = vmatpush1.msra.mxu0 %v246
      %250 = vmatprep.subr.mxu0 0.0
      %251 = vmatpush1.msra.mxu0 0.0
      %252 = vmatprep.subr.mxu0 0.0
      %253 = vmatpush1.msra.mxu0 0.0
      %254 = vmatprep.subr.mxu0 0.0
      %255 = vmatpush1.msra.mxu0 0.0
      %256 = vmatprep.subr.mxu0 0.0
      %257 = vmatpush1.msra.mxu0 0.0
      %258 = vmatprep.subr.mxu0 0.0
      %259 = vmatpush1.msra.mxu0 0.0
      %260 = vmatprep.subr.mxu0 0.0
      %261 = vmatpush1.msra.mxu0 0.0
      %262 = vmatprep.subr.mxu0 0.0
      %263 = vmatpush1.msra.mxu0 0.0
      %264 = vmatprep.subr.mxu0 0.0
      %265 = vmatpush1.msra.mxu0 0.0
      %266 = vmatprep.subr.mxu0 0.0
      %267 = vmatpush1.msra.mxu0 0.0
      %268 = vmatprep.subr.mxu0 0.0
      %269 = vmatpush1.msra.mxu0 0.0
      %270 = vmatprep.subr.mxu0 0.0
      %271 = vmatpush1.msra.mxu0 0.0
      %272 = vmatprep.subr.mxu0 0.0
      %273 = vmatpush1.msra.mxu0 0.0
      %274 = vmatprep.subr.mxu0 0.0
      %275 = vmatpush1.msra.mxu0 0.0
      %276 = vmatprep.subr.mxu0 0.0
      %277 = vmatpush1.msra.mxu0 0.0
      %278 = vmatprep.subr.mxu0 0.0
      %279 = vmatpush1.msra.mxu0 0.0
      %280 = vmatprep.subr.mxu0 0.0
      %281 = vmatpush1.msra.mxu0 0.0
      %282 = vmatprep.subr.mxu0 0.0
      %283 = vmatpush1.msra.mxu0 0.0
      %284 = vmatprep.subr.mxu0 0.0
      %285 = vmatpush1.msra.mxu0 0.0
      %286 = vmatprep.subr.mxu0 0.0
      %287 = vmatpush1.msra.mxu0 0.0
      %288 = vmatprep.subr.mxu0 0.0
      %289 = vmatpush1.msra.mxu0 0.0
      %290 = vmatprep.subr.mxu0 0.0
      %291 = vmatpush1.msra.mxu0 0.0
      %292 = vmatprep.subr.mxu0 0.0
      %293 = vmatpush1.msra.mxu0 0.0
      %294 = vmatprep.subr.mxu0 0.0
      %295 = vmatpush1.msra.mxu0 0.0
      %296 = vmatprep.subr.mxu0 0.0
      %297 = vmatpush1.msra.mxu0 0.0
      %298 = vmatprep.subr.mxu0 0.0
      %299 = vmatpush1.msra.mxu0 0.0
      %300 = vmatprep.subr.mxu0 0.0
      %301 = vmatpush1.msra.mxu0 0.0
      %302 = vmatprep.subr.mxu0 0.0
      %303 = vmatpush1.msra.mxu0 0.0
      %304 = vmatprep.subr.mxu0 0.0
      %305 = vmatpush1.msra.mxu0 0.0
      %306 = vmatprep.subr.mxu0 0.0
      %307 = vmatpush1.msra.mxu0 0.0
      %308 = vmatprep.subr.mxu0 0.0
      %309 = vmatpush1.msra.mxu0 0.0
      %310 = vmatprep.subr.mxu0 0.0
      %311 = vmatpush1.msra.mxu0 0.0
      %312 = vmatprep.mubr.f32.mxu0 0.0
      %313 = vmatmul.mubr.f32.gmra.mrb[0].mxu0 %v242
      %v314 = vpop.f32.mrb[0].mxu0
      %v315 = vadd.f32 %v238, %v314
      %v316 = vpop.f32.mrb[0].mxu0
      %317 = vdwg.mxu0
      %v318 = vxor.u32 %v315, 2147483648
      %v319 = vmul.f32 %v318, 1.442695
      %v320 = vpow.pop %v319
      %v321 = vadd.f32 %v320, 1.0
      %v322 = vrcp.pop %v321
      %v323 = vmul.f32 1.0, %v322
      %v326 = vunpack.c.l.s4 1966171168
      %v327 = vunpack.c.0.s8 %v326
      %v328 = vlaneseq
      %v329 = vshrl.u32 %v328, 7
      %v330 = vsub.s32 %v327, %v329
      %v331 = vrot.slane %v323, %v330
      %v332 = vcombine.high %v331, %v331
      %v334 = vunpack.c.l.s4 1966171168
      %v335 = vunpack.c.0.s8 %v334
      %v336 = vlaneseq
      %v337 = vshrl.u32 %v336, 7
      %v338 = vsub.s32 %v335, %v337
      %v339 = vrot.slane %v331, %v338
      %v341 = vunpack.c.l.s4 1966171168
      %v342 = vunpack.c.0.s8 %v341
      %v343 = vlaneseq
      %v344 = vshrl.u32 %v343, 7
      %v345 = vsub.s32 %v342, %v344
      %v346 = vrot.slane %v332, %v345
      %vm349 = vcmask 516096
      %350 = vst.msk [vmem:[#allocation6] sm:$0x1] %vm349, %v339
      %351 = vst.msk [vmem:[#allocation6 + $0x1] sm:$0x1] %vm349, %v346
    $region33: #{tpu_custom_call.1} parent=1 // pred_fallthru
      _
    // Predicated region
    $region34: #{tpu_custom_call.1} parent=1 // pred_check
      _
    $region35: #{tpu_custom_call.1} parent=1 // pred_check_branch
      %353 = sbr.rel (0) target = $region37
    $region36: #{tpu_custom_call.1} parent=1 // pred_region
      %s355 = ssub.s32 32, 32
      %356 = vsyncadd [#allocation5], %s355
      %s357 = sshll.u32 [#allocation6], 4
      %s358 = int_to_ptr.vmem [resolvable:$true] %s357
      %363 = dma.vmem_to_hbm [thread:$0]  %s358, 32, %s5, [#allocation5], 16, 16, 1
    $region37: #{tpu_custom_call.1} parent=1 // pred_fallthru
      _
    // Predicated region
    $region38: #{tpu_custom_call.1} parent=1 // pred_check
      _
    $region39: #{tpu_custom_call.1} parent=1 // pred_check_branch
      %365 = sbr.rel (0) target = $region41
    $region40: #{tpu_custom_call.1} parent=1 // pred_region
      %366 = dma.done [#allocation5], 32
    $region41: #{tpu_custom_call.1} parent=1 // pred_fallthru
      _
    %367 = vsyncpa [#allocation4], 1
    %368 = vsyncpa [#allocation5], 1

</llo_original>
